<compile_context>
chip_gen: v7x
topology: tpu7x:2x2x1
jax: 0.10.0
libtpu: 0.0.40
codegen_flags: <defaults>
</compile_context>

<pallas_src>
import functools

import jax
import jax.numpy as jnp
from jax.experimental import pallas as pl
from jax.experimental.pallas import tpu as pltpu


NEG_SLOPE = 0.01  # PyTorch nn.LeakyReLU default negative_slope


def _vertex_update_kernel(e_ref, n_ref, we_ref, wn_ref, b_ref, o_ref):
    # e_ref, n_ref  : (tr, L)  lane-dense activation tiles (L multiple of N_s)
    # we_ref, wn_ref: (L, L)   block-diagonal weights, resident across the grid
    # b_ref         : (1, L)   tiled bias
    # o_ref         : (tr, L)  output tile
    y = jnp.dot(e_ref[...], we_ref[...], preferred_element_type=jnp.float32)
    y = y + jnp.dot(n_ref[...], wn_ref[...], preferred_element_type=jnp.float32)
    y = y + b_ref[...]
    y = jnp.where(y > 0, y, NEG_SLOPE * y)          # LeakyReLU
    o_ref[...] = y.astype(o_ref.dtype)


@functools.partial(jax.jit, static_argnames=("tr",))
def vertex_update_low(edge_feature_high, node_feature_low, weight, bias, *, tr=None):
    """Pallas implementation of VertexUpdateLow.forward.

    edge_feature_high : (T, N_sq, N_s) float32
    node_feature_low  : (T, N_sq, N_s) float32
    weight            : (Cout, Cin)    float32  (nn.Linear layout, Cin = 2*N_s)
    bias              : (Cout,)        float32  (Cout = N_s)
    returns           : (T, N_sq, N_s) float32
    """
    T, N_sq, N_s = edge_feature_high.shape
    Cout, Cin = weight.shape
    assert Cin == 2 * N_s and Cout == N_s

    M = T * N_sq

    # Split the linear layer: y = edge @ W_e + node @ W_n + b   (no concat copy).
    w_e = weight[:, :N_s].T          # (N_s, N_s)
    w_n = weight[:, N_s:].T          # (N_s, N_s)

    # Lane-dense row packing: fold P rows into the 128-lane axis.
    if (128 % N_s == 0) and (M % (128 // N_s) == 0):
        P = 128 // N_s
    else:
        P = 1  # TODO(synk): N_s that doesn't divide 128 keeps the narrow-lane path
    L = P * N_s
    Mr = M // P

    e2 = edge_feature_high.reshape(Mr, L)   # free (row-major contiguous) reshape
    n2 = node_feature_low.reshape(Mr, L)
    if P > 1:
        eye = jnp.eye(P, dtype=weight.dtype)
        w_e = jnp.kron(eye, w_e)            # (L, L) block-diagonal
        w_n = jnp.kron(eye, w_n)
        b2 = jnp.tile(bias, P).reshape(1, L)
    else:
        b2 = bias.reshape(1, L)

    # Row tile: large enough to amortize per-step overhead, small enough that
    # double-buffered e/n/out tiles (+ resident weights) fit scoped VMEM on
    # v5e/v6e/v7x:  3 tiles * 2 bufs * tr*L*4B ~= 3 MiB at tr=1024, L=128.
    if tr is None:
        tr = Mr if Mr <= 1024 else 1024
    grid = (pl.cdiv(Mr, tr),)

    cost = pl.CostEstimate(
        flops=2 * 2 * Mr * L * L,                       # two (tr,L)x(L,L) matmuls
        transcendentals=0,
        bytes_accessed=4 * (3 * Mr * L + 2 * L * L + L),
    )

    out = pl.pallas_call(
        _vertex_update_kernel,
        out_shape=jax.ShapeDtypeStruct((Mr, L), edge_feature_high.dtype),
        grid_spec=pltpu.PrefetchScalarGridSpec(
            num_scalar_prefetch=0,
            grid=grid,
            in_specs=[
                pl.BlockSpec((tr, L), lambda i: (i, 0)),   # edge tile
                pl.BlockSpec((tr, L), lambda i: (i, 0)),   # node tile
                pl.BlockSpec((L, L), lambda i: (0, 0)),    # W_e (resident)
                pl.BlockSpec((L, L), lambda i: (0, 0)),    # W_n (resident)
                pl.BlockSpec((1, L), lambda i: (0, 0)),    # bias (resident)
            ],
            out_specs=pl.BlockSpec((tr, L), lambda i: (i, 0)),
        ),
        compiler_params=pltpu.CompilerParams(
            dimension_semantics=("parallel",),
        ),
        cost_estimate=cost,
    )(e2, n2, w_e, w_n, b2)

    return out.reshape(T, N_sq, N_s)


def _reference(edge, node, weight, bias):
    x = jnp.concatenate([edge, node], axis=2)
    T, N_sq, Cin = x.shape
    x = x.reshape(T * N_sq, Cin)
    y = x @ weight.T + bias
    y = jnp.where(y > 0, y, NEG_SLOPE * y)
    return y.reshape(T, N_sq, weight.shape[0])


if __name__ == "__main__":
    # Small shapes consistent with the module (Cout = N_s, Cin = 2*N_s).
    T, N_sq, N_s = 2, 8, 32
    Cin, Cout = 2 * N_s, N_s

    key = jax.random.PRNGKey(0)
    k_e, k_n, k_w, k_b = jax.random.split(key, 4)

    edge_feature_high = jax.random.normal(k_e, (T, N_sq, N_s), dtype=jnp.float32)
    node_feature_low = jax.random.normal(k_n, (T, N_sq, N_s), dtype=jnp.float32)

    bound = 1.0 / (Cin ** 0.5)
    weight = jax.random.uniform(k_w, (Cout, Cin), minval=-bound, maxval=bound,
                                dtype=jnp.float32)
    bias = jax.random.uniform(k_b, (Cout,), minval=-bound, maxval=bound,
                              dtype=jnp.float32)

    out = vertex_update_low(edge_feature_high, node_feature_low, weight, bias)
    out = jax.block_until_ready(out)

    ref = _reference(edge_feature_high, node_feature_low, weight, bias)
    assert out.shape == (T, N_sq, N_s), out.shape
    assert jnp.allclose(out, ref, atol=1e-5, rtol=1e-5), "mismatch vs reference"

    print("KERNEL_OK")
</pallas_src>

<mosaic_0001>
module attributes {stable_mosaic.version = 11 : i64} {
  func.func @_vertex_update_kernel(%arg0: i32, %arg1: memref<4x128xf32, #tpu.memory_space<vmem>>, %arg2: memref<4x128xf32, #tpu.memory_space<vmem>>, %arg3: memref<128x128xf32, #tpu.memory_space<vmem>>, %arg4: memref<128x128xf32, #tpu.memory_space<vmem>>, %arg5: memref<1x128xf32, #tpu.memory_space<vmem>>, %arg6: memref<4x128xf32, #tpu.memory_space<vmem>>) attributes {dimension_semantics = [#tpu.dimension_semantics<parallel>], iteration_bounds = array<i64: 1>, scalar_prefetch = 0 : i64, scratch_operands = 0 : i64, tpu.core_type = #tpu.core_type<tc>, window_params = [{transform_indices = @transform_0, window_bounds = array<i64: 4, 128>}, {transform_indices = @transform_1, window_bounds = array<i64: 4, 128>}, {pipeline_mode = #tpu.pipeline_mode<synchronous>, transform_indices = @transform_2, window_bounds = array<i64: 128, 128>}, {pipeline_mode = #tpu.pipeline_mode<synchronous>, transform_indices = @transform_3, window_bounds = array<i64: 128, 128>}, {pipeline_mode = #tpu.pipeline_mode<synchronous>, transform_indices = @transform_4, window_bounds = array<i64: 1, 128>}, {transform_indices = @transform_5, window_bounds = array<i64: 4, 128>}]} {
    %c0 = arith.constant 0 : index
    %c0_0 = arith.constant 0 : index
    %0 = vector.load %arg1[%c0, %c0_0] : memref<4x128xf32, #tpu.memory_space<vmem>>, vector<4x128xf32>
    %c0_1 = arith.constant 0 : index
    %c0_2 = arith.constant 0 : index
    %1 = vector.load %arg3[%c0_1, %c0_2] : memref<128x128xf32, #tpu.memory_space<vmem>>, vector<128x128xf32>
    %cst = arith.constant dense<0.000000e+00> : vector<4x128xf32>
    %2 = tpu.matmul %0, %1, %cst {dimension_numbers = #tpu.dot_dimension_numbers<[1], [0], [0], [1], [0, 0, 1, 1], [], []>} : vector<4x128xf32>, vector<128x128xf32>, vector<4x128xf32> -> vector<4x128xf32>
    %c0_3 = arith.constant 0 : index
    %c0_4 = arith.constant 0 : index
    %3 = vector.load %arg2[%c0_3, %c0_4] : memref<4x128xf32, #tpu.memory_space<vmem>>, vector<4x128xf32>
    %c0_5 = arith.constant 0 : index
    %c0_6 = arith.constant 0 : index
    %4 = vector.load %arg4[%c0_5, %c0_6] : memref<128x128xf32, #tpu.memory_space<vmem>>, vector<128x128xf32>
    %cst_7 = arith.constant dense<0.000000e+00> : vector<4x128xf32>
    %5 = tpu.matmul %3, %4, %cst_7 {dimension_numbers = #tpu.dot_dimension_numbers<[1], [0], [0], [1], [0, 0, 1, 1], [], []>} : vector<4x128xf32>, vector<128x128xf32>, vector<4x128xf32> -> vector<4x128xf32>
    %6 = arith.addf %2, %5 : vector<4x128xf32>
    %c0_8 = arith.constant 0 : index
    %c0_9 = arith.constant 0 : index
    %7 = vector.load %arg5[%c0_8, %c0_9] : memref<1x128xf32, #tpu.memory_space<vmem>>, vector<1x128xf32>
    %8 = vector.broadcast %7 : vector<1x128xf32> to vector<4x128xf32>
    %9 = arith.addf %6, %8 : vector<4x128xf32>
    %cst_10 = arith.constant 0.000000e+00 : f32
    %10 = vector.broadcast %cst_10 : f32 to vector<4x128xf32>
    %11 = arith.cmpf ogt, %9, %10 : vector<4x128xf32>
    %cst_11 = arith.constant 0.00999999977 : f32
    %12 = vector.broadcast %cst_11 : f32 to vector<4x128xf32>
    %13 = arith.mulf %12, %9 : vector<4x128xf32>
    %14 = arith.select %11, %9, %13 : vector<4x128xi1>, vector<4x128xf32>
    %c0_12 = arith.constant 0 : index
    %c0_13 = arith.constant 0 : index
    %15 = vector.load %arg6[%c0_12, %c0_13] : memref<4x128xf32, #tpu.memory_space<vmem>>, vector<4x128xf32>
    tpu.vector_store %arg6[%c0_12, %c0_13], %14 {strides = array<i32>} : memref<4x128xf32, #tpu.memory_space<vmem>>, vector<4x128xf32>,
    return
  }
  func.func @transform_0(%arg0: i32) -> (i32, i32) {
    %c0_i32 = arith.constant 0 : i32
    %c0_i32_0 = arith.constant 0 : i32
    return %arg0, %c0_i32 : i32, i32
  }
  func.func @transform_1(%arg0: i32) -> (i32, i32) {
    %c0_i32 = arith.constant 0 : i32
    %c0_i32_0 = arith.constant 0 : i32
    return %arg0, %c0_i32 : i32, i32
  }
  func.func @transform_2(%arg0: i32) -> (i32, i32) {
    %c0_i32 = arith.constant 0 : i32
    %c0_i32_0 = arith.constant 0 : i32
    %c0_i32_1 = arith.constant 0 : i32
    return %c0_i32, %c0_i32_0 : i32, i32
  }
  func.func @transform_3(%arg0: i32) -> (i32, i32) {
    %c0_i32 = arith.constant 0 : i32
    %c0_i32_0 = arith.constant 0 : i32
    %c0_i32_1 = arith.constant 0 : i32
    return %c0_i32, %c0_i32_0 : i32, i32
  }
  func.func @transform_4(%arg0: i32) -> (i32, i32) {
    %c0_i32 = arith.constant 0 : i32
    %c0_i32_0 = arith.constant 0 : i32
    %c0_i32_1 = arith.constant 0 : i32
    return %c0_i32, %c0_i32_0 : i32, i32
  }
  func.func @transform_5(%arg0: i32) -> (i32, i32) {
    %c0_i32 = arith.constant 0 : i32
    %c0_i32_0 = arith.constant 0 : i32
    return %arg0, %c0_i32 : i32, i32
  }
}

</mosaic_0001>

<llo_original>
// kernel: tile.8
$region0: #{tile.8}
  #allocation0 [shape = 's32[1]{0}', space=sflag, size = 0x4, scoped, tag = 'scoped memory for tile.8']
  %s0 = inlined_call_operand.vmem [shape: f32[32], index: 0, kind: input, shape index: {}]
  %s1 = inlined_call_operand.vmem [shape: f32[4,32], index: 1, kind: output, shape index: {}]
  // Predicated region
  $region2: #{tile.8} parent=0 // pred_check
    _
  $region3: #{tile.8} parent=0 // pred_check_branch
    %3 = sbr.rel (0) target = $region5
  $region4: #{tile.8} parent=0 // pred_region
    _
  $region5: #{tile.8} parent=0 // pred_fallthru
    _
  %v4 = vld [vmem:[%s0] ss:$0 sm:$0xff]
  %5 = vst [vmem:[%s1] sm:$0xf] %v4

// kernel: tile.9
$region0: #{tile.9}
  %s0 = inlined_call_operand.vmem [shape: f32[4,32], index: 0, kind: input, shape index: {}]
  %s1 = inlined_call_operand.vmem [shape: f32[1,128], index: 1, kind: output, shape index: {}]
  $region1: #{tile.9} parent=0
    #allocation0 [shape = 'u8[4096]{0}', space=vmem, size = 0x1000, scoped, tag = 'scoped mem for output reshape']
    #allocation1 [shape = 'u8[4096]{0}', space=vmem, size = 0x1000, scoped, tag = 'scoped mem for input reshape']
    %s3 = sshllo.u32 0, 4
    %v4 = vld [vmem:[%s0] sm:%s3]
    %5 = vst [vmem:[#allocation1] sm:%s3] %v4
    %v6 = vld [vmem:[#allocation1] sm:$0x1]
    %vm7 = vcmask 261120
    %8 = vst.msk [vmem:[#allocation0] sm:$0x1] %vm7, %v6
    %s9 = scalar_lea.vmem [#allocation1], 3
    %v10 = vld [vmem:[%s9] sm:$0x1]
    %11 = vrot.lane.b32.xlu0 %v10, 96
    %v12 = vpop.permute.xlu0 %11
    %vm13 = vcmask 1048320
    %14 = vst.msk [vmem:[#allocation0] sm:$0x1] %vm13, %v12
    %s15 = scalar_lea.vmem [#allocation1], 2
    %v16 = vld [vmem:[%s15] sm:$0x1]
    %17 = vrot.lane.b32.xlu0 %v16, 64
    %v18 = vpop.permute.xlu0 %17
    %vm19 = vcmask 785920
    %20 = vst.msk [vmem:[#allocation0] sm:$0x1] %vm19, %v18
    %s21 = scalar_lea.vmem [#allocation1], 1
    %v22 = vld [vmem:[%s21] sm:$0x1]
    %23 = vrot.lane.b32.xlu0 %v22, 32
    %v24 = vpop.permute.xlu0 %23
    %vm25 = vcmask 523520
    %26 = vst.msk [vmem:[#allocation0] sm:$0x1] %vm25, %v24
    %s28 = sshllo.u32 0, 1
    %v30 = vld [vmem:[#allocation0] sm:%s28]
    %s31 = sshllo.u32 0, 1
    %32 = vst [vmem:[%s1] sm:%s31] %v30

// kernel: vertex_update_low.1
$region0: #{vertex_update_low.1}
  #allocation0 [shape = 'u32[]', space=smem, size = 0x4, offset = 0x4, fixed_abs, tag = 'smem constant byte address 0x4 - core index']
  #allocation1 [shape = 'u32[144,128]{1,0:T(1,128)}', space=vmem, size = 0x12000, scoped, tag = 'internal scratch']
  %s0 = inlined_call_operand.vmem [shape: f32[4,128], index: 0, kind: input, shape index: {}]
  %s1 = inlined_call_operand.vmem [shape: f32[4,128], index: 1, kind: input, shape index: {}]
  %s2 = inlined_call_operand.vmem [shape: f32[128,128], index: 2, kind: input, shape index: {}]
  %s3 = inlined_call_operand.vmem [shape: f32[128,128], index: 3, kind: input, shape index: {}]
  %s4 = inlined_call_operand.vmem [shape: f32[1,128], index: 4, kind: input, shape index: {}]
  %s5 = inlined_call_operand.vmem [shape: f32[4,128], index: 5, kind: output, shape index: {}]
  %s6 = sld [smem:[#allocation0]]
  $region30: #{vertex_update_low.1} parent=0
    _
  %s8 = ssub.s32 1, %s6
  %s9 = scalar_select 0, %s8, %s6
  // Predicated region
  $region2: #{vertex_update_low.1} parent=0 // pred_check
    _
  $region3: #{vertex_update_low.1} parent=0 // pred_check_branch
    %11 = sbr.rel (0) target = $region5
  $region4: #{vertex_update_low.1} parent=0 // pred_region
    _
  $region5: #{vertex_update_low.1} parent=0 // pred_fallthru
    _
  // Predicated region
  $region6: #{vertex_update_low.1} parent=0 // pred_check
    _
  $region7: #{vertex_update_low.1} parent=0 // pred_check_branch
    %13 = sbr.rel (0) target = $region9
  $region8: #{vertex_update_low.1} parent=0 // pred_region
    _
  $region9: #{vertex_update_low.1} parent=0 // pred_fallthru
    _
  // Predicated region
  $region10: #{vertex_update_low.1} parent=0 // pred_check
    _
  $region11: #{vertex_update_low.1} parent=0 // pred_check_branch
    %15 = sbr.rel (0) target = $region13
  $region12: #{vertex_update_low.1} parent=0 // pred_region
    _
  $region13: #{vertex_update_low.1} parent=0 // pred_fallthru
    _
  // Predicated region
  $region14: #{vertex_update_low.1} parent=0 // pred_check
    _
  $region15: #{vertex_update_low.1} parent=0 // pred_check_branch
    %17 = sbr.rel (0) target = $region17
  $region16: #{vertex_update_low.1} parent=0 // pred_region
    _
  $region17: #{vertex_update_low.1} parent=0 // pred_fallthru
    _
  // Predicated region
  $region18: #{vertex_update_low.1} parent=0 // pred_check
    _
  $region19: #{vertex_update_low.1} parent=0 // pred_check_branch
    %19 = sbr.rel (0) target = $region21
  $region20: #{vertex_update_low.1} parent=0 // pred_region
    _
  $region21: #{vertex_update_low.1} parent=0 // pred_fallthru
    _
  %v20 = vld [vmem:[%s0] sm:$0xf]
  %v21 = vld [vmem:[%s2] sm:$0xff]
  %v22 = vld [vmem:[%s2 + $0x8] sm:$0xff]
  %v23 = vld [vmem:[%s2 + $0x10] sm:$0xff]
  %v24 = vld [vmem:[%s2 + $0x18] sm:$0xff]
  %v25 = vld [vmem:[%s2 + $0x20] sm:$0xff]
  %v26 = vld [vmem:[%s2 + $0x28] sm:$0xff]
  %v27 = vld [vmem:[%s2 + $0x30] sm:$0xff]
  %v28 = vld [vmem:[%s2 + $0x38] sm:$0xff]
  %v29 = vld [vmem:[%s2 + $0x40] sm:$0xff]
  %v30 = vld [vmem:[%s2 + $0x48] sm:$0xff]
  %v31 = vld [vmem:[%s2 + $0x50] sm:$0xff]
  %v32 = vld [vmem:[%s2 + $0x58] sm:$0xff]
  %v33 = vld [vmem:[%s2 + $0x60] sm:$0xff]
  %v34 = vld [vmem:[%s2 + $0x68] sm:$0xff]
  %v35 = vld [vmem:[%s2 + $0x70] sm:$0xff]
  %v36 = vld [vmem:[%s2 + $0x78] sm:$0xff]
  %v37 = vld [vmem:[%s1] sm:$0xf]
  %v38 = vld [vmem:[%s3] sm:$0xff]
  %v39 = vld [vmem:[%s3 + $0x8] sm:$0xff]
  %v40 = vld [vmem:[%s3 + $0x10] sm:$0xff]
  %v41 = vld [vmem:[%s3 + $0x18] sm:$0xff]
  %v42 = vld [vmem:[%s3 + $0x20] sm:$0xff]
  %v43 = vld [vmem:[%s3 + $0x28] sm:$0xff]
  %v44 = vld [vmem:[%s3 + $0x30] sm:$0xff]
  %v45 = vld [vmem:[%s3 + $0x38] sm:$0xff]
  %v46 = vld [vmem:[%s3 + $0x40] sm:$0xff]
  %v47 = vld [vmem:[%s3 + $0x48] sm:$0xff]
  %v48 = vld [vmem:[%s3 + $0x50] sm:$0xff]
  %v49 = vld [vmem:[%s3 + $0x58] sm:$0xff]
  %v50 = vld [vmem:[%s3 + $0x60] sm:$0xff]
  %v51 = vld [vmem:[%s3 + $0x68] sm:$0xff]
  %v52 = vld [vmem:[%s3 + $0x70] sm:$0xff]
  %v53 = vld [vmem:[%s3 + $0x78] sm:$0xff]
  %54 = vmatprep.subr.mxu0 0.0
  %55 = vmatpush1.msra.mxu0 %v38
  %56 = vmatprep.subr.mxu0 0.0
  %57 = vmatpush1.msra.mxu0 %v39
  %58 = vmatprep.subr.mxu0 0.0
  %59 = vmatpush1.msra.mxu0 %v40
  %60 = vmatprep.subr.mxu0 0.0
  %61 = vmatpush1.msra.mxu0 %v41
  %62 = vmatprep.subr.mxu0 0.0
  %63 = vmatpush1.msra.mxu0 %v42
  %64 = vmatprep.subr.mxu0 0.0
  %65 = vmatpush1.msra.mxu0 %v43
  %66 = vmatprep.subr.mxu0 0.0
  %67 = vmatpush1.msra.mxu0 %v44
  %68 = vmatprep.subr.mxu0 0.0
  %69 = vmatpush1.msra.mxu0 %v45
  %70 = vmatprep.subr.mxu0 0.0
  %71 = vmatpush1.msra.mxu0 %v46
  %72 = vmatprep.subr.mxu0 0.0
  %73 = vmatpush1.msra.mxu0 %v47
  %74 = vmatprep.subr.mxu0 0.0
  %75 = vmatpush1.msra.mxu0 %v48
  %76 = vmatprep.subr.mxu0 0.0
  %77 = vmatpush1.msra.mxu0 %v49
  %78 = vmatprep.subr.mxu0 0.0
  %79 = vmatpush1.msra.mxu0 %v50
  %80 = vmatprep.subr.mxu0 0.0
  %81 = vmatpush1.msra.mxu0 %v51
  %82 = vmatprep.subr.mxu0 0.0
  %83 = vmatpush1.msra.mxu0 %v52
  %84 = vmatprep.subr.mxu0 0.0
  %85 = vmatpush1.msra.mxu0 %v53
  %86 = vmatprep.subr.mxu0 0.0
  %87 = vmatpush1.msra.mxu0 0.0
  %88 = vmatprep.subr.mxu0 0.0
  %89 = vmatpush1.msra.mxu0 0.0
  %90 = vmatprep.subr.mxu0 0.0
  %91 = vmatpush1.msra.mxu0 0.0
  %92 = vmatprep.subr.mxu0 0.0
  %93 = vmatpush1.msra.mxu0 0.0
  %94 = vmatprep.subr.mxu0 0.0
  %95 = vmatpush1.msra.mxu0 0.0
  %96 = vmatprep.subr.mxu0 0.0
  %97 = vmatpush1.msra.mxu0 0.0
  %98 = vmatprep.subr.mxu0 0.0
  %99 = vmatpush1.msra.mxu0 0.0
  %100 = vmatprep.subr.mxu0 0.0
  %101 = vmatpush1.msra.mxu0 0.0
  %102 = vmatprep.subr.mxu0 0.0
  %103 = vmatpush1.msra.mxu0 0.0
  %104 = vmatprep.subr.mxu0 0.0
  %105 = vmatpush1.msra.mxu0 0.0
  %106 = vmatprep.subr.mxu0 0.0
  %107 = vmatpush1.msra.mxu0 0.0
  %108 = vmatprep.subr.mxu0 0.0
  %109 = vmatpush1.msra.mxu0 0.0
  %110 = vmatprep.subr.mxu0 0.0
  %111 = vmatpush1.msra.mxu0 0.0
  %112 = vmatprep.subr.mxu0 0.0
  %113 = vmatpush1.msra.mxu0 0.0
  %114 = vmatprep.subr.mxu0 0.0
  %115 = vmatpush1.msra.mxu0 0.0
  %116 = vmatprep.subr.mxu0 0.0
  %117 = vmatpush1.msra.mxu0 0.0
  %118 = vmatprep.mubr.f32.mxu0 0.0
  %119 = vmatmul.mubr.f32.gmra.mrb[0].mxu0 %v37
  %v120 = vpop.f32.mrb[0].mxu0
  %v121 = vadd.f32 0.0, %v120
  %v122 = vpop.f32.mrb[0].mxu0
  %123 = vdwg.mxu0
  %124 = vmatprep.subr.mxu0 0.0
  %125 = vmatpush1.msra.mxu0 %v21
  %126 = vmatprep.subr.mxu0 0.0
  %127 = vmatpush1.msra.mxu0 %v22
  %128 = vmatprep.subr.mxu0 0.0
  %129 = vmatpush1.msra.mxu0 %v23
  %130 = vmatprep.subr.mxu0 0.0
  %131 = vmatpush1.msra.mxu0 %v24
  %132 = vmatprep.subr.mxu0 0.0
  %133 = vmatpush1.msra.mxu0 %v25
  %134 = vmatprep.subr.mxu0 0.0
  %135 = vmatpush1.msra.mxu0 %v26
  %136 = vmatprep.subr.mxu0 0.0
  %137 = vmatpush1.msra.mxu0 %v27
  %138 = vmatprep.subr.mxu0 0.0
  %139 = vmatpush1.msra.mxu0 %v28
  %140 = vmatprep.subr.mxu0 0.0
  %141 = vmatpush1.msra.mxu0 %v29
  %142 = vmatprep.subr.mxu0 0.0
  %143 = vmatpush1.msra.mxu0 %v30
  %144 = vmatprep.subr.mxu0 0.0
  %145 = vmatpush1.msra.mxu0 %v31
  %146 = vmatprep.subr.mxu0 0.0
  %147 = vmatpush1.msra.mxu0 %v32
  %148 = vmatprep.subr.mxu0 0.0
  %149 = vmatpush1.msra.mxu0 %v33
  %150 = vmatprep.subr.mxu0 0.0
  %151 = vmatpush1.msra.mxu0 %v34
  %152 = vmatprep.subr.mxu0 0.0
  %153 = vmatpush1.msra.mxu0 %v35
  %154 = vmatprep.subr.mxu0 0.0
  %155 = vmatpush1.msra.mxu0 %v36
  %156 = vmatprep.subr.mxu0 0.0
  %157 = vmatpush1.msra.mxu0 0.0
  %158 = vmatprep.subr.mxu0 0.0
  %159 = vmatpush1.msra.mxu0 0.0
  %160 = vmatprep.subr.mxu0 0.0
  %161 = vmatpush1.msra.mxu0 0.0
  %162 = vmatprep.subr.mxu0 0.0
  %163 = vmatpush1.msra.mxu0 0.0
  %164 = vmatprep.subr.mxu0 0.0
  %165 = vmatpush1.msra.mxu0 0.0
  %166 = vmatprep.subr.mxu0 0.0
  %167 = vmatpush1.msra.mxu0 0.0
  %168 = vmatprep.subr.mxu0 0.0
  %169 = vmatpush1.msra.mxu0 0.0
  %170 = vmatprep.subr.mxu0 0.0
  %171 = vmatpush1.msra.mxu0 0.0
  %172 = vmatprep.subr.mxu0 0.0
  %173 = vmatpush1.msra.mxu0 0.0
  %174 = vmatprep.subr.mxu0 0.0
  %175 = vmatpush1.msra.mxu0 0.0
  %176 = vmatprep.subr.mxu0 0.0
  %177 = vmatpush1.msra.mxu0 0.0
  %178 = vmatprep.subr.mxu0 0.0
  %179 = vmatpush1.msra.mxu0 0.0
  %180 = vmatprep.subr.mxu0 0.0
  %181 = vmatpush1.msra.mxu0 0.0
  %182 = vmatprep.subr.mxu0 0.0
  %183 = vmatpush1.msra.mxu0 0.0
  %184 = vmatprep.subr.mxu0 0.0
  %185 = vmatpush1.msra.mxu0 0.0
  %186 = vmatprep.subr.mxu0 0.0
  %187 = vmatpush1.msra.mxu0 0.0
  %188 = vmatprep.mubr.f32.mxu0 0.0
  %189 = vmatmul.mubr.f32.gmra.mrb[0].mxu0 %v20
  %v190 = vpop.f32.mrb[0].mxu0
  %v191 = vadd.f32 %v121, %v190
  %v192 = vpop.f32.mrb[0].mxu0
  %193 = vdwg.mxu0
  %v194 = vld [vmem:[%s4] sm:$0x1]
  %v196 = vlaneseq
  %v197 = vshrl.u32 %v196, 7
  %v198 = vsub.s32 0, %v197
  %v199 = vrot.slane %v194, %v198
  %v201 = vadd.f32 %v191, %v199
  %vm202 = vcmp.gt.f32.partialorder %v201, 0.0
  %v203 = vmul.f32 %v201, 0.01
  %v204 = vsel %vm202, %v201, %v203
  %205 = vst [vmem:[%s5] sm:$0xf] %v204
  // Predicated region
  $region22: #{vertex_update_low.1} parent=0 // pred_check
    _
  $region23: #{vertex_update_low.1} parent=0 // pred_check_branch
    %207 = sbr.rel (0) target = $region25
  $region24: #{vertex_update_low.1} parent=0 // pred_region
    _
  $region25: #{vertex_update_low.1} parent=0 // pred_fallthru
    _
  // Predicated region
  $region26: #{vertex_update_low.1} parent=0 // pred_check
    _
  $region27: #{vertex_update_low.1} parent=0 // pred_check_branch
    %209 = sbr.rel (0) target = $region29
  $region28: #{vertex_update_low.1} parent=0 // pred_region
    _
  $region29: #{vertex_update_low.1} parent=0 // pred_fallthru
    _

</llo_original>
